<compile_context>
chip_gen: v5e
topology: v5e:2x2
jax: 0.10.0
libtpu: 0.0.40
codegen_flags: <defaults>
</compile_context>

<pallas_src>
import jax
import jax.numpy as jnp
import numpy as np
from jax.experimental import pallas as pl
from jax.experimental.pallas import tpu as pltpu


def _round_up(x, m):
    return ((x + m - 1) // m) * m


def _embedding_onehot_kernel(idx_ref, table_ref, out_ref):
    # idx_ref  : VMEM (TB, F)     int32  -- offsets already added in wrapper
    # table_ref: VMEM (Vp, F*D)   f32    -- field-widened, resident across grid
    # out_ref  : VMEM (TB, F*D)   f32    -- lane-dense output tile
    tb, num_fields = idx_ref.shape
    vocab_p = table_ref.shape[0]

    idx = idx_ref[...]                                              # (TB, F)
    lane_v = jax.lax.broadcasted_iota(jnp.int32, (tb, vocab_p), 1)

    # Combined one-hot: the per-field vocab ranges are disjoint, so each row
    # has exactly F ones (for valid input indices).
    onehot = (lane_v == idx[:, 0:1]).astype(jnp.float32)
    for f in range(1, num_fields):                                  # static, tiny
        onehot = onehot + (lane_v == idx[:, f:f + 1]).astype(jnp.float32)

    # Single fused MXU matmul -> full-width lane-dense store.
    out_ref[...] = jnp.dot(
        onehot,
        table_ref[...],
        preferred_element_type=jnp.float32,
        precision=jax.lax.Precision.HIGHEST,       # exact gather of f32 table
    ).astype(out_ref.dtype)


def features_embedding(x, table, offsets, *, block_b=2048):
    """x: (B, F) int; table: (V, D) f32; offsets: (F,) int -> (B, F, D) f32."""
    batch, num_fields = x.shape
    vocab, embed_dim = table.shape
    out_w = num_fields * embed_dim

    # (1) Hoist the offset add out of the kernel.
    idx = x.astype(jnp.int32) + offsets.astype(jnp.int32)[None, :]

    # (2) Field-widened table (V, F*D): row r belonging to field f keeps its
    #     embedding only in columns [f*D, (f+1)*D).  One-time prep in the
    #     wrapper; costs no extra VMEM when F*D <= 128 (lane padding).
    row_field = jnp.searchsorted(
        offsets.astype(jnp.int32),
        jnp.arange(vocab, dtype=jnp.int32),
        side="right",
    ) - 1                                                            # (V,)
    field_sel = (
        row_field[:, None] == jnp.arange(num_fields, dtype=jnp.int32)[None, :]
    ).astype(table.dtype)                                            # (V, F)
    table_w = (field_sel[:, :, None] * table[:, None, :]).reshape(vocab, out_w)

    vocab_p = _round_up(vocab, 128)
    if vocab_p != vocab:
        table_w = jnp.pad(table_w, ((0, vocab_p - vocab), (0, 0)))

    # (3) Batch tiling: large tiles (multiple of 8 sublanes); ensure >= 2 grid
    #     steps when the batch allows so v7x can shard the "parallel" axis
    #     across its two TensorCores.
    block_b = max(8, _round_up(block_b, 8))
    batch_r8 = _round_up(batch, 8)
    if batch_r8 > block_b:
        tb = block_b
    elif batch_r8 >= 16:
        tb = _round_up(pl.cdiv(batch_r8, 2), 8)
    else:
        tb = batch_r8
    batch_p = _round_up(batch, tb)
    if batch_p != batch:
        # Padded rows produce garbage in a few lanes; sliced off below.
        idx = jnp.pad(idx, ((0, batch_p - batch), (0, 0)))
    grid = (batch_p // tb,)

    # (4) Explicit scoped-VMEM limit (v5e defaults to only ~16 MiB):
    #     single-buffered table + double-buffered idx/out tiles + slack.
    def _lane(n):
        return _round_up(max(n, 1), 128)

    table_vmem = vocab_p * _lane(out_w) * 4
    io_vmem = 2 * tb * (_lane(num_fields) + _lane(out_w)) * 4
    vmem_limit = int(min(64 << 20, max(table_vmem + io_vmem + (4 << 20),
                                       32 << 20)))

    # TODO(synk): for real FM vocabularies (lane-padded table approaching VMEM,
    # especially v7x's 64 MiB) switch the table to memory_space=pl.ANY and do an
    # in-kernel DMA row gather with scalar-prefetched indices instead of
    # continuing to scale the one-hot matmul.
    out_flat = pl.pallas_call(
        _embedding_onehot_kernel,
        out_shape=jax.ShapeDtypeStruct((batch_p, out_w), table.dtype),
        grid=grid,
        in_specs=[
            pl.BlockSpec((tb, num_fields), lambda i: (i, 0)),
            # Constant index_map -> table resident; single buffer is enough.
            pl.BlockSpec((vocab_p, out_w), lambda i: (0, 0),
                         pipeline_mode=pl.Buffered(1)),
        ],
        out_specs=pl.BlockSpec((tb, out_w), lambda i: (i, 0)),
        compiler_params=pltpu.CompilerParams(
            dimension_semantics=("parallel",),
            vmem_limit_bytes=vmem_limit,
        ),
        cost_estimate=pl.CostEstimate(
            flops=2 * batch_p * vocab_p * out_w,
            transcendentals=0,
            bytes_accessed=(batch_p * num_fields * 4
                            + vocab_p * out_w * 4
                            + batch_p * out_w * 4),
        ),
    )(idx, table_w)

    return out_flat[:batch].reshape(batch, num_fields, embed_dim)


def make_params(field_dims, embed_dim, key):
    """Deterministic xavier_uniform init of the embedding table + offsets."""
    vocab = int(sum(field_dims))
    limit = float(np.sqrt(6.0 / (vocab + embed_dim)))
    table = jax.random.uniform(
        key, (vocab, embed_dim), dtype=jnp.float32, minval=-limit, maxval=limit
    )
    offsets = jnp.asarray(
        np.array((0, *np.cumsum(field_dims)[:-1]), dtype=np.int32)
    )
    return table, offsets


if __name__ == "__main__":
    field_dims = (10, 20, 30, 40)  # num_fields = 4, vocab = 100
    embed_dim = 32
    batch = 2

    key = jax.random.PRNGKey(0)
    k_table, k_idx = jax.random.split(key)

    table, offsets = make_params(field_dims, embed_dim, k_table)

    # Per-field indices in [0, field_dims[f]) — what the module expects.
    cols = []
    for f, dim in enumerate(field_dims):
        k_idx, kf = jax.random.split(k_idx)
        cols.append(jax.random.randint(kf, (batch, 1), 0, dim, dtype=jnp.int32))
    x = jnp.concatenate(cols, axis=1)  # (batch, num_fields) int32

    out = features_embedding(x, table, offsets)
    out = jax.block_until_ready(out)

    # Pure-JAX reference check.
    ref = table[x + offsets[None, :]]
    assert out.shape == (batch, len(field_dims), embed_dim)
    np.testing.assert_allclose(
        np.asarray(out), np.asarray(ref), rtol=1e-5, atol=1e-6
    )

    print("KERNEL_OK")
</pallas_src>

<mosaic_0001>
module attributes {stable_mosaic.version = 11 : i64} {
  func.func @_embedding_onehot_kernel(%arg0: i32, %arg1: memref<8x4xi32, #tpu.memory_space<vmem>>, %arg2: memref<128x128xf32, #tpu.memory_space<vmem>>, %arg3: memref<8x128xf32, #tpu.memory_space<vmem>>) attributes {dimension_semantics = [#tpu.dimension_semantics<parallel>], iteration_bounds = array<i64: 1>, scalar_prefetch = 0 : i64, scratch_operands = 0 : i64, tpu.core_type = #tpu.core_type<tc>, window_params = [{transform_indices = @transform_0, window_bounds = array<i64: 8, 4>}, {pipeline_mode = #tpu.pipeline_mode<synchronous>, transform_indices = @transform_1, window_bounds = array<i64: 128, 128>}, {transform_indices = @transform_2, window_bounds = array<i64: 8, 128>}]} {
    %c0 = arith.constant 0 : index
    %c0_0 = arith.constant 0 : index
    %0 = vector.load %arg1[%c0, %c0_0] : memref<8x4xi32, #tpu.memory_space<vmem>>, vector<8x4xi32>
    %1 = tpu.iota {dimensions = array<i32: 1>} : vector<8x128xi32>
    %2 = vector.extract_strided_slice %0 {offsets = [0, 0], sizes = [8, 1], strides = [1, 1]} : vector<8x4xi32> to vector<8x1xi32>
    %3 = vector.broadcast %2 : vector<8x1xi32> to vector<8x128xi32>
    %4 = arith.cmpi eq, %1, %3 : vector<8x128xi32>
    %5 = arith.extui %4 : vector<8x128xi1> to vector<8x128xi32>
    %6 = arith.sitofp %5 : vector<8x128xi32> to vector<8x128xf32>
    %7 = vector.extract_strided_slice %0 {offsets = [0, 1], sizes = [8, 1], strides = [1, 1]} : vector<8x4xi32> to vector<8x1xi32>
    %8 = vector.broadcast %7 : vector<8x1xi32> to vector<8x128xi32>
    %9 = arith.cmpi eq, %1, %8 : vector<8x128xi32>
    %10 = arith.extui %9 : vector<8x128xi1> to vector<8x128xi32>
    %11 = arith.sitofp %10 : vector<8x128xi32> to vector<8x128xf32>
    %12 = arith.addf %6, %11 : vector<8x128xf32>
    %13 = vector.extract_strided_slice %0 {offsets = [0, 2], sizes = [8, 1], strides = [1, 1]} : vector<8x4xi32> to vector<8x1xi32>
    %14 = vector.broadcast %13 : vector<8x1xi32> to vector<8x128xi32>
    %15 = arith.cmpi eq, %1, %14 : vector<8x128xi32>
    %16 = arith.extui %15 : vector<8x128xi1> to vector<8x128xi32>
    %17 = arith.sitofp %16 : vector<8x128xi32> to vector<8x128xf32>
    %18 = arith.addf %12, %17 : vector<8x128xf32>
    %19 = vector.extract_strided_slice %0 {offsets = [0, 3], sizes = [8, 1], strides = [1, 1]} : vector<8x4xi32> to vector<8x1xi32>
    %20 = vector.broadcast %19 : vector<8x1xi32> to vector<8x128xi32>
    %21 = arith.cmpi eq, %1, %20 : vector<8x128xi32>
    %22 = arith.extui %21 : vector<8x128xi1> to vector<8x128xi32>
    %23 = arith.sitofp %22 : vector<8x128xi32> to vector<8x128xf32>
    %24 = arith.addf %18, %23 : vector<8x128xf32>
    %c0_1 = arith.constant 0 : index
    %c0_2 = arith.constant 0 : index
    %25 = vector.load %arg2[%c0_1, %c0_2] : memref<128x128xf32, #tpu.memory_space<vmem>>, vector<128x128xf32>
    %cst = arith.constant dense<0.000000e+00> : vector<8x128xf32>
    %26 = tpu.matmul %24, %25, %cst {dimension_numbers = #tpu.dot_dimension_numbers<[1], [0], [0], [1], [0, 0, 1, 1], [], []>, precision = #tpu.contract_precision<fp32>} : vector<8x128xf32>, vector<128x128xf32>, vector<8x128xf32> -> vector<8x128xf32>
    %c0_3 = arith.constant 0 : index
    %c0_4 = arith.constant 0 : index
    %27 = vector.load %arg3[%c0_3, %c0_4] : memref<8x128xf32, #tpu.memory_space<vmem>>, vector<8x128xf32>
    tpu.vector_store %arg3[%c0_3, %c0_4], %26 {strides = array<i32>} : memref<8x128xf32, #tpu.memory_space<vmem>>, vector<8x128xf32>,
    return
  }
  func.func @transform_0(%arg0: i32) -> (i32, i32) {
    %c0_i32 = arith.constant 0 : i32
    %c0_i32_0 = arith.constant 0 : i32
    return %arg0, %c0_i32 : i32, i32
  }
  func.func @transform_1(%arg0: i32) -> (i32, i32) {
    %c0_i32 = arith.constant 0 : i32
    %c0_i32_0 = arith.constant 0 : i32
    %c0_i32_1 = arith.constant 0 : i32
    return %c0_i32, %c0_i32_0 : i32, i32
  }
  func.func @transform_2(%arg0: i32) -> (i32, i32) {
    %c0_i32 = arith.constant 0 : i32
    %c0_i32_0 = arith.constant 0 : i32
    return %arg0, %c0_i32 : i32, i32
  }
}

</mosaic_0001>

<llo_original>
// kernel: tpu_custom_call.1
$region0: #{tpu_custom_call.1}
  #allocation0 [shape = 'u32[]', space=smem, size = 0x4, offset = 0x4, fixed_abs, tag = 'smem constant byte address 0x4 - core index']
  #allocation1 [shape = 'u32[72,128]{1,0:T(1,128)}', space=vmem, size = 0x9000, scoped, tag = 'internal scratch']
  %s0 = inlined_call_operand.vmem [shape: s32[8,4], index: 0, kind: input, shape index: {}]
  %s1 = inlined_call_operand.hbm [shape: f32[128,128], index: 1, kind: input, shape index: {}]
  %s2 = inlined_call_operand.hbm [shape: f32[8,128], index: 2, kind: output, shape index: {}]
  %s3 = sld [smem:[#allocation0]]
  $region22: #{tpu_custom_call.1} parent=0
    _
  %s5 = ssub.s32 1, %s3
  %s6 = scalar_select 0, %s5, %s3
  $region1: #{tpu_custom_call.1} parent=0
    #allocation2 [shape = 'u8[65536]{0}', space=vmem, size = 0x10000, scoped, tag = 'input window, operand 1, single buffered']
    #allocation3 [shape = 's32[1]{0}', space=sflag, size = 0x4, scoped, tag = 'scoped memory for tpu_custom_call.1']
    #allocation4 [shape = 's32[1]{0}', space=sflag, size = 0x4, scoped, tag = 'scoped memory for tpu_custom_call.1']
    #allocation5 [shape = 'u8[4096]{0}', space=vmem, size = 0x1000, scoped, tag = 'output window, operand 0, single buffered']
    %7 = vsyncpa [#allocation3], 0
    %8 = vsyncpa [#allocation4], 0
    // Predicated region
    $region2: #{tpu_custom_call.1} parent=1 // pred_check
      _
    $region3: #{tpu_custom_call.1} parent=1 // pred_check_branch
      %10 = sbr.rel (0) target = $region5
    $region4: #{tpu_custom_call.1} parent=1 // pred_region
      _
    $region5: #{tpu_custom_call.1} parent=1 // pred_fallthru
      _
    // Predicated region
    $region6: #{tpu_custom_call.1} parent=1 // pred_check
      _
    $region7: #{tpu_custom_call.1} parent=1 // pred_check_branch
      %12 = sbr.rel (0) target = $region9
    $region8: #{tpu_custom_call.1} parent=1 // pred_region
      %14 = vsyncadd [#allocation3], 0
      %s15 = sshll.u32 %s1, 4
      %s16 = int_to_ptr.hbm [resolvable:$true] %s15
      %s17 = sshll.u32 [#allocation2], 4
      %s18 = int_to_ptr.vmem [resolvable:$true] %s17
      %23 = dma.hbm_to_vmem [thread:$0]  %s16, 2048, %s18, [#allocation3], 128, 128, 8
    $region9: #{tpu_custom_call.1} parent=1 // pred_fallthru
      _
    // Predicated region
    $region10: #{tpu_custom_call.1} parent=1 // pred_check
      _
    $region11: #{tpu_custom_call.1} parent=1 // pred_check_branch
      %25 = sbr.rel (0) target = $region13
    $region12: #{tpu_custom_call.1} parent=1 // pred_region
      %27 = dma.done [#allocation3], 2048
    $region13: #{tpu_custom_call.1} parent=1 // pred_fallthru
      _
    %v28 = vld [vmem:[%s0] sm:$0xff]
    %v29 = vlaneseq
    %v30 = vand.u32 %v29, 127
    %31 = vset.pattern.permute.xlu0 0
    %32 = vperm.xlu0 %31, %v28
    %v33 = vpop.permute.xlu0 %32
    %vm34 = vcmp.eq.s32.totalorder %v30, %v33
    %v35 = vsel %vm34, 1, 0
    %v36 = vcvt.s32.f32 %v35
    %37 = vset.pattern.permute.xlu0 1
    %38 = vperm.xlu0 %37, %v28
    %v39 = vpop.permute.xlu0 %38
    %vm40 = vcmp.eq.s32.totalorder %v30, %v39
    %v41 = vsel %vm40, 1, 0
    %v42 = vcvt.s32.f32 %v41
    %v43 = vadd.f32 %v36, %v42
    %44 = vset.pattern.permute.xlu0 2
    %45 = vperm.xlu0 %44, %v28
    %v46 = vpop.permute.xlu0 %45
    %vm47 = vcmp.eq.s32.totalorder %v30, %v46
    %v48 = vsel %vm47, 1, 0
    %v49 = vcvt.s32.f32 %v48
    %v50 = vadd.f32 %v43, %v49
    %51 = vset.pattern.permute.xlu0 3
    %52 = vperm.xlu0 %51, %v28
    %v53 = vpop.permute.xlu0 %52
    %vm54 = vcmp.eq.s32.totalorder %v30, %v53
    %v55 = vsel %vm54, 1, 0
    %v56 = vcvt.s32.f32 %v55
    %v57 = vadd.f32 %v50, %v56
    %v58 = vld [vmem:[#allocation2] sm:$0xff]
    %v59 = vld [vmem:[#allocation2 + $0x8] sm:$0xff]
    %v60 = vld [vmem:[#allocation2 + $0x10] sm:$0xff]
    %v61 = vld [vmem:[#allocation2 + $0x18] sm:$0xff]
    %v62 = vld [vmem:[#allocation2 + $0x20] sm:$0xff]
    %v63 = vld [vmem:[#allocation2 + $0x28] sm:$0xff]
    %v64 = vld [vmem:[#allocation2 + $0x30] sm:$0xff]
    %v65 = vld [vmem:[#allocation2 + $0x38] sm:$0xff]
    %v66 = vld [vmem:[#allocation2 + $0x40] sm:$0xff]
    %v67 = vld [vmem:[#allocation2 + $0x48] sm:$0xff]
    %v68 = vld [vmem:[#allocation2 + $0x50] sm:$0xff]
    %v69 = vld [vmem:[#allocation2 + $0x58] sm:$0xff]
    %v70 = vld [vmem:[#allocation2 + $0x60] sm:$0xff]
    %v71 = vld [vmem:[#allocation2 + $0x68] sm:$0xff]
    %v72 = vld [vmem:[#allocation2 + $0x70] sm:$0xff]
    %v73 = vld [vmem:[#allocation2 + $0x78] sm:$0xff]
    %v74 = vand.u32 %v73, 4294901760
    %75 = vmatpush.msra.mxu0 %v74
    %v76 = vand.u32 %v72, 4294901760
    %77 = vmatpush.msra.mxu0 %v76
    %v78 = vand.u32 %v71, 4294901760
    %79 = vmatpush.msra.mxu0 %v78
    %v80 = vand.u32 %v70, 4294901760
    %81 = vmatpush.msra.mxu0 %v80
    %v82 = vand.u32 %v69, 4294901760
    %83 = vmatpush.msra.mxu0 %v82
    %v84 = vand.u32 %v68, 4294901760
    %85 = vmatpush.msra.mxu0 %v84
    %v86 = vand.u32 %v67, 4294901760
    %87 = vmatpush.msra.mxu0 %v86
    %v88 = vand.u32 %v66, 4294901760
    %89 = vmatpush.msra.mxu0 %v88
    %v90 = vand.u32 %v65, 4294901760
    %91 = vmatpush.msra.mxu0 %v90
    %v92 = vand.u32 %v64, 4294901760
    %93 = vmatpush.msra.mxu0 %v92
    %v94 = vand.u32 %v63, 4294901760
    %95 = vmatpush.msra.mxu0 %v94
    %v96 = vand.u32 %v62, 4294901760
    %97 = vmatpush.msra.mxu0 %v96
    %v98 = vand.u32 %v61, 4294901760
    %99 = vmatpush.msra.mxu0 %v98
    %v100 = vand.u32 %v60, 4294901760
    %101 = vmatpush.msra.mxu0 %v100
    %v102 = vand.u32 %v59, 4294901760
    %103 = vmatpush.msra.mxu0 %v102
    %v104 = vand.u32 %v58, 4294901760
    %105 = vmatpush.msra.mxu0 %v104
    %v106 = vand.u32 %v57, 4294901760
    %v107 = vsub.f32 %v57, %v106
    %v108 = vand.u32 %v107, 4294901760
    %v109 = vsub.f32 %v107, %v108
    %v110 = vand.u32 %v109, 4294901760
    %111 = vmatmul.f32.gmra.mxu0 %v110
    %v112 = vpop.f32.mrf.mxu0
    %v113 = vadd.f32 0.0, %v112
    %114 = vdwg.mxu0
    %v115 = vand.u32 %v73, 4294901760
    %v116 = vsub.f32 %v73, %v115
    %v117 = vand.u32 %v116, 4294901760
    %v118 = vsub.f32 %v116, %v117
    %v119 = vand.u32 %v118, 4294901760
    %120 = vmatpush.msra.mxu0 %v119
    %v121 = vand.u32 %v72, 4294901760
    %v122 = vsub.f32 %v72, %v121
    %v123 = vand.u32 %v122, 4294901760
    %v124 = vsub.f32 %v122, %v123
    %v125 = vand.u32 %v124, 4294901760
    %126 = vmatpush.msra.mxu0 %v125
    %v127 = vand.u32 %v71, 4294901760
    %v128 = vsub.f32 %v71, %v127
    %v129 = vand.u32 %v128, 4294901760
    %v130 = vsub.f32 %v128, %v129
    %v131 = vand.u32 %v130, 4294901760
    %132 = vmatpush.msra.mxu0 %v131
    %v133 = vand.u32 %v70, 4294901760
    %v134 = vsub.f32 %v70, %v133
    %v135 = vand.u32 %v134, 4294901760
    %v136 = vsub.f32 %v134, %v135
    %v137 = vand.u32 %v136, 4294901760
    %138 = vmatpush.msra.mxu0 %v137
    %v139 = vand.u32 %v69, 4294901760
    %v140 = vsub.f32 %v69, %v139
    %v141 = vand.u32 %v140, 4294901760
    %v142 = vsub.f32 %v140, %v141
    %v143 = vand.u32 %v142, 4294901760
    %144 = vmatpush.msra.mxu0 %v143
    %v145 = vand.u32 %v68, 4294901760
    %v146 = vsub.f32 %v68, %v145
    %v147 = vand.u32 %v146, 4294901760
    %v148 = vsub.f32 %v146, %v147
    %v149 = vand.u32 %v148, 4294901760
    %150 = vmatpush.msra.mxu0 %v149
    %v151 = vand.u32 %v67, 4294901760
    %v152 = vsub.f32 %v67, %v151
    %v153 = vand.u32 %v152, 4294901760
    %v154 = vsub.f32 %v152, %v153
    %v155 = vand.u32 %v154, 4294901760
    %156 = vmatpush.msra.mxu0 %v155
    %v157 = vand.u32 %v66, 4294901760
    %v158 = vsub.f32 %v66, %v157
    %v159 = vand.u32 %v158, 4294901760
    %v160 = vsub.f32 %v158, %v159
    %v161 = vand.u32 %v160, 4294901760
    %162 = vmatpush.msra.mxu0 %v161
    %v163 = vand.u32 %v65, 4294901760
    %v164 = vsub.f32 %v65, %v163
    %v165 = vand.u32 %v164, 4294901760
    %v166 = vsub.f32 %v164, %v165
    %v167 = vand.u32 %v166, 4294901760
    %168 = vmatpush.msra.mxu0 %v167
    %v169 = vand.u32 %v64, 4294901760
    %v170 = vsub.f32 %v64, %v169
    %v171 = vand.u32 %v170, 4294901760
    %v172 = vsub.f32 %v170, %v171
    %v173 = vand.u32 %v172, 4294901760
    %174 = vmatpush.msra.mxu0 %v173
    %v175 = vand.u32 %v63, 4294901760
    %v176 = vsub.f32 %v63, %v175
    %v177 = vand.u32 %v176, 4294901760
    %v178 = vsub.f32 %v176, %v177
    %v179 = vand.u32 %v178, 4294901760
    %180 = vmatpush.msra.mxu0 %v179
    %v181 = vand.u32 %v62, 4294901760
    %v182 = vsub.f32 %v62, %v181
    %v183 = vand.u32 %v182, 4294901760
    %v184 = vsub.f32 %v182, %v183
    %v185 = vand.u32 %v184, 4294901760
    %186 = vmatpush.msra.mxu0 %v185
    %v187 = vand.u32 %v61, 4294901760
    %v188 = vsub.f32 %v61, %v187
    %v189 = vand.u32 %v188, 4294901760
    %v190 = vsub.f32 %v188, %v189
    %v191 = vand.u32 %v190, 4294901760
    %192 = vmatpush.msra.mxu0 %v191
    %v193 = vand.u32 %v60, 4294901760
    %v194 = vsub.f32 %v60, %v193
    %v195 = vand.u32 %v194, 4294901760
    %v196 = vsub.f32 %v194, %v195
    %v197 = vand.u32 %v196, 4294901760
    %198 = vmatpush.msra.mxu0 %v197
    %v199 = vand.u32 %v59, 4294901760
    %v200 = vsub.f32 %v59, %v199
    %v201 = vand.u32 %v200, 4294901760
    %v202 = vsub.f32 %v200, %v201
    %v203 = vand.u32 %v202, 4294901760
    %204 = vmatpush.msra.mxu0 %v203
    %v205 = vand.u32 %v58, 4294901760
    %v206 = vsub.f32 %v58, %v205
    %v207 = vand.u32 %v206, 4294901760
    %v208 = vsub.f32 %v206, %v207
    %v209 = vand.u32 %v208, 4294901760
    %210 = vmatpush.msra.mxu0 %v209
    %v211 = vand.u32 %v57, 4294901760
    %212 = vmatmul.f32.gmra.mxu0 %v211
    %v213 = vpop.f32.mrf.mxu0
    %v214 = vadd.f32 %v113, %v213
    %215 = vdwg.mxu0
    %v216 = vand.u32 %v73, 4294901760
    %v217 = vsub.f32 %v73, %v216
    %218 = vmatpush.msra.mxu0 %v217
    %v219 = vand.u32 %v72, 4294901760
    %v220 = vsub.f32 %v72, %v219
    %221 = vmatpush.msra.mxu0 %v220
    %v222 = vand.u32 %v71, 4294901760
    %v223 = vsub.f32 %v71, %v222
    %224 = vmatpush.msra.mxu0 %v223
    %v225 = vand.u32 %v70, 4294901760
    %v226 = vsub.f32 %v70, %v225
    %227 = vmatpush.msra.mxu0 %v226
    %v228 = vand.u32 %v69, 4294901760
    %v229 = vsub.f32 %v69, %v228
    %230 = vmatpush.msra.mxu0 %v229
    %v231 = vand.u32 %v68, 4294901760
    %v232 = vsub.f32 %v68, %v231
    %233 = vmatpush.msra.mxu0 %v232
    %v234 = vand.u32 %v67, 4294901760
    %v235 = vsub.f32 %v67, %v234
    %236 = vmatpush.msra.mxu0 %v235
    %v237 = vand.u32 %v66, 4294901760
    %v238 = vsub.f32 %v66, %v237
    %239 = vmatpush.msra.mxu0 %v238
    %v240 = vand.u32 %v65, 4294901760
    %v241 = vsub.f32 %v65, %v240
    %242 = vmatpush.msra.mxu0 %v241
    %v243 = vand.u32 %v64, 4294901760
    %v244 = vsub.f32 %v64, %v243
    %245 = vmatpush.msra.mxu0 %v244
    %v246 = vand.u32 %v63, 4294901760
    %v247 = vsub.f32 %v63, %v246
    %248 = vmatpush.msra.mxu0 %v247
    %v249 = vand.u32 %v62, 4294901760
    %v250 = vsub.f32 %v62, %v249
    %251 = vmatpush.msra.mxu0 %v250
    %v252 = vand.u32 %v61, 4294901760
    %v253 = vsub.f32 %v61, %v252
    %254 = vmatpush.msra.mxu0 %v253
    %v255 = vand.u32 %v60, 4294901760
    %v256 = vsub.f32 %v60, %v255
    %257 = vmatpush.msra.mxu0 %v256
    %v258 = vand.u32 %v59, 4294901760
    %v259 = vsub.f32 %v59, %v258
    %260 = vmatpush.msra.mxu0 %v259
    %v261 = vand.u32 %v58, 4294901760
    %v262 = vsub.f32 %v58, %v261
    %263 = vmatpush.msra.mxu0 %v262
    %v264 = vand.u32 %v57, 4294901760
    %v265 = vsub.f32 %v57, %v264
    %266 = vmatmul.f32.gmra.mxu0 %v265
    %v267 = vpop.f32.mrf.mxu0
    %v268 = vadd.f32 %v214, %v267
    %269 = vdwg.mxu0
    %v270 = vand.u32 %v73, 4294901760
    %271 = vmatpush.msra.mxu0 %v270
    %v272 = vand.u32 %v72, 4294901760
    %273 = vmatpush.msra.mxu0 %v272
    %v274 = vand.u32 %v71, 4294901760
    %275 = vmatpush.msra.mxu0 %v274
    %v276 = vand.u32 %v70, 4294901760
    %277 = vmatpush.msra.mxu0 %v276
    %v278 = vand.u32 %v69, 4294901760
    %279 = vmatpush.msra.mxu0 %v278
    %v280 = vand.u32 %v68, 4294901760
    %281 = vmatpush.msra.mxu0 %v280
    %v282 = vand.u32 %v67, 4294901760
    %283 = vmatpush.msra.mxu0 %v282
    %v284 = vand.u32 %v66, 4294901760
    %285 = vmatpush.msra.mxu0 %v284
    %v286 = vand.u32 %v65, 4294901760
    %287 = vmatpush.msra.mxu0 %v286
    %v288 = vand.u32 %v64, 4294901760
    %289 = vmatpush.msra.mxu0 %v288
    %v290 = vand.u32 %v63, 4294901760
    %291 = vmatpush.msra.mxu0 %v290
    %v292 = vand.u32 %v62, 4294901760
    %293 = vmatpush.msra.mxu0 %v292
    %v294 = vand.u32 %v61, 4294901760
    %295 = vmatpush.msra.mxu0 %v294
    %v296 = vand.u32 %v60, 4294901760
    %297 = vmatpush.msra.mxu0 %v296
    %v298 = vand.u32 %v59, 4294901760
    %299 = vmatpush.msra.mxu0 %v298
    %v300 = vand.u32 %v58, 4294901760
    %301 = vmatpush.msra.mxu0 %v300
    %v302 = vand.u32 %v57, 4294901760
    %v303 = vsub.f32 %v57, %v302
    %v304 = vand.u32 %v303, 4294901760
    %305 = vmatmul.f32.gmra.mxu0 %v304
    %v306 = vpop.f32.mrf.mxu0
    %v307 = vadd.f32 %v268, %v306
    %308 = vdwg.mxu0
    %v309 = vand.u32 %v73, 4294901760
    %v310 = vsub.f32 %v73, %v309
    %v311 = vand.u32 %v310, 4294901760
    %312 = vmatpush.msra.mxu0 %v311
    %v313 = vand.u32 %v72, 4294901760
    %v314 = vsub.f32 %v72, %v313
    %v315 = vand.u32 %v314, 4294901760
    %316 = vmatpush.msra.mxu0 %v315
    %v317 = vand.u32 %v71, 4294901760
    %v318 = vsub.f32 %v71, %v317
    %v319 = vand.u32 %v318, 4294901760
    %320 = vmatpush.msra.mxu0 %v319
    %v321 = vand.u32 %v70, 4294901760
    %v322 = vsub.f32 %v70, %v321
    %v323 = vand.u32 %v322, 4294901760
    %324 = vmatpush.msra.mxu0 %v323
    %v325 = vand.u32 %v69, 4294901760
    %v326 = vsub.f32 %v69, %v325
    %v327 = vand.u32 %v326, 4294901760
    %328 = vmatpush.msra.mxu0 %v327
    %v329 = vand.u32 %v68, 4294901760
    %v330 = vsub.f32 %v68, %v329
    %v331 = vand.u32 %v330, 4294901760
    %332 = vmatpush.msra.mxu0 %v331
    %v333 = vand.u32 %v67, 4294901760
    %v334 = vsub.f32 %v67, %v333
    %v335 = vand.u32 %v334, 4294901760
    %336 = vmatpush.msra.mxu0 %v335
    %v337 = vand.u32 %v66, 4294901760
    %v338 = vsub.f32 %v66, %v337
    %v339 = vand.u32 %v338, 4294901760
    %340 = vmatpush.msra.mxu0 %v339
    %v341 = vand.u32 %v65, 4294901760
    %v342 = vsub.f32 %v65, %v341
    %v343 = vand.u32 %v342, 4294901760
    %344 = vmatpush.msra.mxu0 %v343
    %v345 = vand.u32 %v64, 4294901760
    %v346 = vsub.f32 %v64, %v345
    %v347 = vand.u32 %v346, 4294901760
    %348 = vmatpush.msra.mxu0 %v347
    %v349 = vand.u32 %v63, 4294901760
    %v350 = vsub.f32 %v63, %v349
    %v351 = vand.u32 %v350, 4294901760
    %352 = vmatpush.msra.mxu0 %v351
    %v353 = vand.u32 %v62, 4294901760
    %v354 = vsub.f32 %v62, %v353
    %v355 = vand.u32 %v354, 4294901760
    %356 = vmatpush.msra.mxu0 %v355
    %v357 = vand.u32 %v61, 4294901760
    %v358 = vsub.f32 %v61, %v357
    %v359 = vand.u32 %v358, 4294901760
    %360 = vmatpush.msra.mxu0 %v359
    %v361 = vand.u32 %v60, 4294901760
    %v362 = vsub.f32 %v60, %v361
    %v363 = vand.u32 %v362, 4294901760
    %364 = vmatpush.msra.mxu0 %v363
    %v365 = vand.u32 %v59, 4294901760
    %v366 = vsub.f32 %v59, %v365
    %v367 = vand.u32 %v366, 4294901760
    %368 = vmatpush.msra.mxu0 %v367
    %v369 = vand.u32 %v58, 4294901760
    %v370 = vsub.f32 %v58, %v369
    %v371 = vand.u32 %v370, 4294901760
    %372 = vmatpush.msra.mxu0 %v371
    %v373 = vand.u32 %v57, 4294901760
    %374 = vmatmul.f32.gmra.mxu0 %v373
    %v375 = vpop.f32.mrf.mxu0
    %v376 = vadd.f32 %v307, %v375
    %377 = vdwg.mxu0
    %v378 = vand.u32 %v73, 4294901760
    %379 = vmatpush.msra.mxu0 %v378
    %v380 = vand.u32 %v72, 4294901760
    %381 = vmatpush.msra.mxu0 %v380
    %v382 = vand.u32 %v71, 4294901760
    %383 = vmatpush.msra.mxu0 %v382
    %v384 = vand.u32 %v70, 4294901760
    %385 = vmatpush.msra.mxu0 %v384
    %v386 = vand.u32 %v69, 4294901760
    %387 = vmatpush.msra.mxu0 %v386
    %v388 = vand.u32 %v68, 4294901760
    %389 = vmatpush.msra.mxu0 %v388
    %v390 = vand.u32 %v67, 4294901760
    %391 = vmatpush.msra.mxu0 %v390
    %v392 = vand.u32 %v66, 4294901760
    %393 = vmatpush.msra.mxu0 %v392
    %v394 = vand.u32 %v65, 4294901760
    %395 = vmatpush.msra.mxu0 %v394
    %v396 = vand.u32 %v64, 4294901760
    %397 = vmatpush.msra.mxu0 %v396
    %v398 = vand.u32 %v63, 4294901760
    %399 = vmatpush.msra.mxu0 %v398
    %v400 = vand.u32 %v62, 4294901760
    %401 = vmatpush.msra.mxu0 %v400
    %v402 = vand.u32 %v61, 4294901760
    %403 = vmatpush.msra.mxu0 %v402
    %v404 = vand.u32 %v60, 4294901760
    %405 = vmatpush.msra.mxu0 %v404
    %v406 = vand.u32 %v59, 4294901760
    %407 = vmatpush.msra.mxu0 %v406
    %v408 = vand.u32 %v58, 4294901760
    %409 = vmatpush.msra.mxu0 %v408
    %v410 = vand.u32 %v57, 4294901760
    %411 = vmatmul.f32.gmra.mxu0 %v410
    %v412 = vpop.f32.mrf.mxu0
    %v413 = vadd.f32 %v376, %v412
    %414 = vdwg.mxu0
    %415 = vst [vmem:[#allocation5] sm:$0xff] %v413
    // Predicated region
    $region14: #{tpu_custom_call.1} parent=1 // pred_check
      _
    $region15: #{tpu_custom_call.1} parent=1 // pred_check_branch
      %417 = sbr.rel (0) target = $region17
    $region16: #{tpu_custom_call.1} parent=1 // pred_region
      %419 = vsyncadd [#allocation4], 0
      %s421 = sshll.u32 [#allocation5], 4
      %s422 = int_to_ptr.vmem [resolvable:$true] %s421
      %s423 = sshll.u32 %s2, 4
      %s424 = int_to_ptr.hbm [resolvable:$true] %s423
      %426 = dma.vmem_to_hbm [thread:$0]  %s422, 128, %s424, [#allocation4]
    $region17: #{tpu_custom_call.1} parent=1 // pred_fallthru
      _
    // Predicated region
    $region18: #{tpu_custom_call.1} parent=1 // pred_check
      _
    $region19: #{tpu_custom_call.1} parent=1 // pred_check_branch
      %428 = sbr.rel (0) target = $region21
    $region20: #{tpu_custom_call.1} parent=1 // pred_region
      %430 = dma.done [#allocation4], 128
    $region21: #{tpu_custom_call.1} parent=1 // pred_fallthru
      _
    %431 = vsyncpa [#allocation3], 1
    %432 = vsyncpa [#allocation4], 1

</llo_original>
